<compile_context>
chip_gen: v7x
topology: tpu7x:2x2x1
jax: 0.10.0
libtpu: 0.0.40
codegen_flags: <defaults>
</compile_context>

<pallas_src>
import math

import jax
import jax.numpy as jnp
from jax.experimental import pallas as pl
from jax.experimental.pallas import tpu as pltpu


def _uncertainty_kernel(scalars_ref, loss0_ref, loss1_ref, out_ref):
    # scalars_ref (SMEM, f32[3]): [exp(-sigma0), exp(-sigma1), sigma0 + sigma1]
    p0 = scalars_ref[0]
    p1 = scalars_ref[1]
    c = scalars_ref[2]
    # Native-dtype loads, upcast in-vreg; minimal body: 2 FMAs + 1 add per vreg.
    l0 = loss0_ref[...].astype(jnp.float32)
    l1 = loss1_ref[...].astype(jnp.float32)
    out_ref[...] = (p0 * l0 + p1 * l1 + c).astype(out_ref.dtype)


_LANE = 128
_MAX_LANES = 2048                     # widest lane-dense tile (unmasked full-width stores)
_MAX_TILE_ROWS = 512                  # 512 x 2048 x 4B = 4 MiB per f32 array per block
_RAGGED_FULL_BLOCK_ELEMS = 1 << 15    # single (1, total) full-array block for small ragged sizes


def uncertainty_loss(loss0, loss1, sigma0, sigma1):
    """Pallas implementation of UncertaintyLoss.forward.

    Returns exp(-sigma0)*loss0 + sigma0 + exp(-sigma1)*loss1 + sigma1 with the
    dtype given by promoting the loss dtypes against the (f32) sigma parameters.
    """
    loss0 = jnp.asarray(loss0)
    loss1 = jnp.asarray(loss1)
    if loss0.shape != loss1.shape:
        # TODO(synk): stream the smaller operand directly (constant / stride-0
        # index_map on broadcast axes) instead of materializing the broadcast.
        loss0, loss1 = jnp.broadcast_arrays(loss0, loss1)

    orig_shape = loss0.shape
    total = max(int(math.prod(orig_shape)), 1)

    # Hoist the scalar math out of the kernel: f32[3] lives in SMEM.
    s0 = jnp.asarray(sigma0, dtype=jnp.float32).reshape(())
    s1 = jnp.asarray(sigma1, dtype=jnp.float32).reshape(())
    scalars = jnp.stack([jnp.exp(-s0), jnp.exp(-s1), s0 + s1])

    out_dtype = jnp.result_type(loss0.dtype, loss1.dtype, jnp.float32)

    # Flat views: contiguous collapse -> free metadata reshape, no HBM traffic.
    flat0 = loss0.reshape(-1)
    flat1 = loss1.reshape(-1)

    pad = 0
    if total % _LANE == 0:
        # Lane-dense 2-D view whose width divides the element count exactly.
        lane_width = next(w for w in (2048, 1024, 512, 256, 128) if total % w == 0)
        rows = total // lane_width
    elif total <= _RAGGED_FULL_BLOCK_ELEMS:
        # Small ragged tensor: one full-array block, no padding required.
        lane_width = total
        rows = 1
    else:
        # Large ragged tensor: unavoidable pad + tail-slice fallback (extra HBM
        # round trip, only taken when total is large AND not a multiple of 128).
        lane_width = _MAX_LANES
        rows = -(-total // lane_width)
        pad = rows * lane_width - total
        flat0 = jnp.pad(flat0, (0, pad))
        flat1 = jnp.pad(flat1, (0, pad))

    l0 = flat0.reshape(rows, lane_width)
    l1 = flat1.reshape(rows, lane_width)

    # Row tile: multiple of the per-dtype sublane packing (8 for f32, 16 for
    # bf16, 32 for int8/fp8), or the full row extent for small inputs.
    min_itemsize = min(
        jnp.dtype(loss0.dtype).itemsize,
        jnp.dtype(loss1.dtype).itemsize,
        jnp.dtype(out_dtype).itemsize,
    )
    sub_mult = max(8, 32 // max(min_itemsize, 1))
    if rows <= sub_mult:
        tile_rows = rows                                   # full-extent row block
    else:
        tile_rows = min(_MAX_TILE_ROWS, -(-rows // sub_mult) * sub_mult)
    grid_rows = -(-rows // tile_rows)                      # ragged tail -> masked boundary block

    # VMEM budget: double-buffered input blocks (native dtype) + output block.
    block_elems = tile_rows * lane_width
    block_bytes = block_elems * (
        jnp.dtype(loss0.dtype).itemsize
        + jnp.dtype(loss1.dtype).itemsize
        + jnp.dtype(out_dtype).itemsize
    )
    vmem_limit = int(min(max(2 * block_bytes + (4 << 20), 32 << 20), 64 << 20))

    out2d = pl.pallas_call(
        _uncertainty_kernel,
        out_shape=jax.ShapeDtypeStruct((rows, lane_width), out_dtype),
        grid_spec=pltpu.PrefetchScalarGridSpec(
            num_scalar_prefetch=0,
            grid=(grid_rows,),
            in_specs=[
                pl.BlockSpec(memory_space=pltpu.MemorySpace.SMEM),        # f32[3] scalars
                pl.BlockSpec((tile_rows, lane_width), lambda i: (i, 0)),  # loss0 tile
                pl.BlockSpec((tile_rows, lane_width), lambda i: (i, 0)),  # loss1 tile
            ],
            out_specs=pl.BlockSpec((tile_rows, lane_width), lambda i: (i, 0)),
        ),
        compiler_params=pltpu.CompilerParams(
            # TODO(synk): on v7x switch this to pltpu.CORE_PARALLEL to shard the
            # row axis across both TensorCores; the plain string is inert but
            # safe on every generation (v5e/v6e have a single TC).
            dimension_semantics=("parallel",),
            vmem_limit_bytes=vmem_limit,
        ),
    )(scalars, l0, l1)

    out_flat = out2d.reshape(-1)
    if pad:
        out_flat = out_flat[:total]
    # TODO(synk): pallas_call has no autodiff rule; wrap in jax.custom_vjp if
    # gradients w.r.t. the learnable sigma0/sigma1 parameters are required.
    # TODO(synk): add an optional fused sum/mean mode (per-block partial sums in
    # scratch) for callers that immediately reduce the loss map.
    return out_flat.reshape(orig_shape)


if __name__ == "__main__":
    key = jax.random.PRNGKey(0)
    k0, k1, k2, k3, k4, k5 = jax.random.split(key, 6)

    # Parameters: deterministic init matching nn.Parameter(torch.zeros(1)).
    sigma0 = jnp.zeros((1,), dtype=jnp.float32)
    sigma1 = jnp.zeros((1,), dtype=jnp.float32)

    def reference(l0, l1, s0, s1):
        p0 = jnp.exp(-s0.reshape(()))
        p1 = jnp.exp(-s1.reshape(()))
        return (p0 * l0 + s0.reshape(())) + (p1 * l1 + s1.reshape(()))

    # 1) Primary test: small elementwise loss maps, f32, lane-divisible total.
    shape = (2, 4, 16, 16)
    loss0 = jax.random.uniform(k0, shape, dtype=jnp.float32)
    loss1 = jax.random.uniform(k1, shape, dtype=jnp.float32)
    out = jax.block_until_ready(uncertainty_loss(loss0, loss1, sigma0, sigma1))
    ref = reference(loss0, loss1, sigma0, sigma1)
    assert out.shape == ref.shape and out.dtype == ref.dtype, (out.shape, out.dtype)
    assert jnp.allclose(out, ref, atol=1e-6, rtol=1e-6)

    # 2) Mixed dtype: bf16 loss0 is streamed in native dtype and upcast in-vreg.
    shape2 = (2, 16, 128)
    loss0b = jax.random.uniform(k2, shape2, dtype=jnp.float32).astype(jnp.bfloat16)
    loss1b = jax.random.uniform(k3, shape2, dtype=jnp.float32)
    out2 = jax.block_until_ready(uncertainty_loss(loss0b, loss1b, sigma0, sigma1))
    ref2 = reference(loss0b, loss1b, sigma0, sigma1)
    assert out2.shape == ref2.shape and out2.dtype == ref2.dtype, (out2.shape, out2.dtype)
    assert jnp.allclose(out2, ref2, atol=1e-5, rtol=1e-5)

    # 3) Small ragged total (not a multiple of 128): single full-array block path.
    shape3 = (3, 5, 7)
    loss0c = jax.random.uniform(k4, shape3, dtype=jnp.float32)
    loss1c = jax.random.uniform(k5, shape3, dtype=jnp.float32)
    out3 = jax.block_until_ready(uncertainty_loss(loss0c, loss1c, sigma0, sigma1))
    ref3 = reference(loss0c, loss1c, sigma0, sigma1)
    assert out3.shape == ref3.shape
    assert jnp.allclose(out3, ref3, atol=1e-6, rtol=1e-6)

    print("KERNEL_OK")
</pallas_src>

<mosaic_0001>
module attributes {stable_mosaic.version = 11 : i64} {
  func.func @_uncertainty_kernel(%arg0: i32, %arg1: memref<3xf32, #tpu.memory_space<smem>>, %arg2: memref<1x2048xf32, #tpu.memory_space<vmem>>, %arg3: memref<1x2048xf32, #tpu.memory_space<vmem>>, %arg4: memref<1x2048xf32, #tpu.memory_space<vmem>>) attributes {dimension_semantics = [#tpu.dimension_semantics<parallel>], iteration_bounds = array<i64: 1>, scalar_prefetch = 0 : i64, scratch_operands = 0 : i64, tpu.core_type = #tpu.core_type<tc>, window_params = [{transform_indices = @transform_0, window_bounds = array<i64: 3>}, {transform_indices = @transform_1, window_bounds = array<i64: 1, 2048>}, {transform_indices = @transform_2, window_bounds = array<i64: 1, 2048>}, {transform_indices = @transform_3, window_bounds = array<i64: 1, 2048>}]} {
    %c0 = arith.constant 0 : index
    %0 = memref.load %arg1[%c0] : memref<3xf32, #tpu.memory_space<smem>>
    %c1 = arith.constant 1 : index
    %1 = memref.load %arg1[%c1] : memref<3xf32, #tpu.memory_space<smem>>
    %c2 = arith.constant 2 : index
    %2 = memref.load %arg1[%c2] : memref<3xf32, #tpu.memory_space<smem>>
    %c0_0 = arith.constant 0 : index
    %c0_1 = arith.constant 0 : index
    %3 = vector.load %arg2[%c0_0, %c0_1] : memref<1x2048xf32, #tpu.memory_space<vmem>>, vector<1x2048xf32>
    %c0_2 = arith.constant 0 : index
    %c0_3 = arith.constant 0 : index
    %4 = vector.load %arg3[%c0_2, %c0_3] : memref<1x2048xf32, #tpu.memory_space<vmem>>, vector<1x2048xf32>
    %5 = vector.broadcast %0 : f32 to vector<1x2048xf32>
    %6 = arith.mulf %5, %3 : vector<1x2048xf32>
    %7 = vector.broadcast %1 : f32 to vector<1x2048xf32>
    %8 = arith.mulf %7, %4 : vector<1x2048xf32>
    %9 = arith.addf %6, %8 : vector<1x2048xf32>
    %10 = vector.broadcast %2 : f32 to vector<1x2048xf32>
    %11 = arith.addf %9, %10 : vector<1x2048xf32>
    %c0_4 = arith.constant 0 : index
    %c0_5 = arith.constant 0 : index
    %12 = vector.load %arg4[%c0_4, %c0_5] : memref<1x2048xf32, #tpu.memory_space<vmem>>, vector<1x2048xf32>
    tpu.vector_store %arg4[%c0_4, %c0_5], %11 {strides = array<i32>} : memref<1x2048xf32, #tpu.memory_space<vmem>>, vector<1x2048xf32>,
    return
  }
  func.func @transform_0(%arg0: i32) -> i32 {
    %c0_i32 = arith.constant 0 : i32
    %c0_i32_0 = arith.constant 0 : i32
    return %c0_i32 : i32
  }
  func.func @transform_1(%arg0: i32) -> (i32, i32) {
    %c0_i32 = arith.constant 0 : i32
    %c0_i32_0 = arith.constant 0 : i32
    return %arg0, %c0_i32 : i32, i32
  }
  func.func @transform_2(%arg0: i32) -> (i32, i32) {
    %c0_i32 = arith.constant 0 : i32
    %c0_i32_0 = arith.constant 0 : i32
    return %arg0, %c0_i32 : i32, i32
  }
  func.func @transform_3(%arg0: i32) -> (i32, i32) {
    %c0_i32 = arith.constant 0 : i32
    %c0_i32_0 = arith.constant 0 : i32
    return %arg0, %c0_i32 : i32, i32
  }
}

</mosaic_0001>

<llo_original>
// kernel: tpu_custom_call.1
$region0: #{tpu_custom_call.1}
  #allocation0 [shape = 'u32[]', space=smem, size = 0x4, offset = 0x4, fixed_abs, tag = 'smem constant byte address 0x4 - core index']
  #allocation1 [shape = 'u32[144,128]{1,0:T(1,128)}', space=vmem, size = 0x12000, scoped, tag = 'internal scratch']
  %s0 = inlined_call_operand.hbm [shape: f32[3], index: 0, kind: input, shape index: {}]
  %s1 = inlined_call_operand.hbm [shape: f32[1,2048], index: 1, kind: input, shape index: {}]
  %s2 = inlined_call_operand.hbm [shape: f32[1,2048], index: 2, kind: input, shape index: {}]
  %s3 = inlined_call_operand.hbm [shape: f32[1,2048], index: 3, kind: output, shape index: {}]
  %s4 = sld [smem:[#allocation0]]
  $region34: #{tpu_custom_call.1} parent=0
    _
  %s6 = ssub.s32 1, %s4
  %s7 = scalar_select 0, %s6, %s4
  $region1: #{tpu_custom_call.1} parent=0
    #allocation2 [shape = 'u8[512]{0}', space=smem, size = 0x200, scoped, tag = 'input window, operand 0, single buffered']
    #allocation3 [shape = 's32[1]{0}', space=sflag, size = 0x4, scoped, tag = 'scoped memory for tpu_custom_call.1']
    #allocation4 [shape = 's32[1]{0}', space=sflag, size = 0x4, scoped, tag = 'scoped memory for tpu_custom_call.1']
    #allocation5 [shape = 's32[1]{0}', space=sflag, size = 0x4, scoped, tag = 'scoped memory for tpu_custom_call.1']
    #allocation6 [shape = 'u8[8192]{0}', space=vmem, size = 0x2000, scoped, tag = 'input window, operand 1, single buffered']
    #allocation7 [shape = 'u8[8192]{0}', space=vmem, size = 0x2000, scoped, tag = 'input window, operand 2, single buffered']
    #allocation8 [shape = 's32[1]{0}', space=sflag, size = 0x4, scoped, tag = 'scoped memory for tpu_custom_call.1']
    #allocation9 [shape = 'u8[8192]{0}', space=vmem, size = 0x2000, scoped, tag = 'output window, operand 0, single buffered']
    %8 = vsyncpa [#allocation5], 0
    %9 = vsyncpa [#allocation3], 0
    %10 = vsyncpa [#allocation8], 0
    %11 = vsyncpa [#allocation4], 0
    // Predicated region
    $region2: #{tpu_custom_call.1} parent=1 // pred_check
      _
    $region3: #{tpu_custom_call.1} parent=1 // pred_check_branch
      %13 = sbr.rel (0) target = $region5
    $region4: #{tpu_custom_call.1} parent=1 // pred_region
      %s15 = ssub.s32 16, 16
      %16 = vsyncadd [#allocation5], %s15
      %19 = dma.hbm_to_smem %s0, 16, [#allocation2], [#allocation5]
    $region5: #{tpu_custom_call.1} parent=1 // pred_fallthru
      _
    // Predicated region
    $region6: #{tpu_custom_call.1} parent=1 // pred_check
      _
    $region7: #{tpu_custom_call.1} parent=1 // pred_check_branch
      %21 = sbr.rel (0) target = $region9
    $region8: #{tpu_custom_call.1} parent=1 // pred_region
      %s23 = ssub.s32 256, 256
      %24 = vsyncadd [#allocation3], %s23
      %s26 = sshll.u32 [#allocation6], 4
      %s27 = int_to_ptr.vmem [resolvable:$true] %s26
      %29 = dma.hbm_to_vmem [thread:$0]  %s1, 256, %s27, [#allocation3]
    $region9: #{tpu_custom_call.1} parent=1 // pred_fallthru
      _
    // Predicated region
    $region10: #{tpu_custom_call.1} parent=1 // pred_check
      _
    $region11: #{tpu_custom_call.1} parent=1 // pred_check_branch
      %31 = sbr.rel (0) target = $region13
    $region12: #{tpu_custom_call.1} parent=1 // pred_region
      %s33 = ssub.s32 256, 256
      %34 = vsyncadd [#allocation8], %s33
      %s36 = sshll.u32 [#allocation7], 4
      %s37 = int_to_ptr.vmem [resolvable:$true] %s36
      %39 = dma.hbm_to_vmem [thread:$0]  %s2, 256, %s37, [#allocation8]
    $region13: #{tpu_custom_call.1} parent=1 // pred_fallthru
      _
    // Predicated region
    $region14: #{tpu_custom_call.1} parent=1 // pred_check
      _
    $region15: #{tpu_custom_call.1} parent=1 // pred_check_branch
      %41 = sbr.rel (0) target = $region17
    $region16: #{tpu_custom_call.1} parent=1 // pred_region
      %42 = dma.done [#allocation5], 16
    $region17: #{tpu_custom_call.1} parent=1 // pred_fallthru
      _
    // Predicated region
    $region18: #{tpu_custom_call.1} parent=1 // pred_check
      _
    $region19: #{tpu_custom_call.1} parent=1 // pred_check_branch
      %44 = sbr.rel (0) target = $region21
    $region20: #{tpu_custom_call.1} parent=1 // pred_region
      %45 = dma.done [#allocation3], 256
    $region21: #{tpu_custom_call.1} parent=1 // pred_fallthru
      _
    // Predicated region
    $region22: #{tpu_custom_call.1} parent=1 // pred_check
      _
    $region23: #{tpu_custom_call.1} parent=1 // pred_check_branch
      %47 = sbr.rel (0) target = $region25
    $region24: #{tpu_custom_call.1} parent=1 // pred_region
      %48 = dma.done [#allocation8], 256
    $region25: #{tpu_custom_call.1} parent=1 // pred_fallthru
      _
    %49 = sfence
    %s50 = sld [smem:[#allocation2]]
    %s51 = sld [smem:[#allocation2 + $0x1]]
    %s52 = sld [smem:[#allocation2 + $0x2]]
    %v53 = vld [vmem:[#allocation6] sm:$0xff]
    %v54 = vld [vmem:[#allocation6 + $0x8] sm:$0xff]
    %v55 = vld [vmem:[#allocation7] sm:$0xff]
    %v56 = vld [vmem:[#allocation7 + $0x8] sm:$0xff]
    %v57 = vstv %s50
    %v58 = vmul.f32 %v57, %v53
    %v59 = vmul.f32 %v57, %v54
    %v60 = vstv %s51
    %v61 = vmul.f32 %v60, %v55
    %v62 = vmul.f32 %v60, %v56
    %v63 = vadd.f32 %v58, %v61
    %v64 = vadd.f32 %v59, %v62
    %v65 = vstv %s52
    %v66 = vadd.f32 %v63, %v65
    %v67 = vadd.f32 %v64, %v65
    %68 = vst [vmem:[#allocation9] sm:$0xff] %v66
    %69 = vst [vmem:[#allocation9 + $0x8] sm:$0xff] %v67
    // Predicated region
    $region26: #{tpu_custom_call.1} parent=1 // pred_check
      _
    $region27: #{tpu_custom_call.1} parent=1 // pred_check_branch
      %71 = sbr.rel (0) target = $region29
    $region28: #{tpu_custom_call.1} parent=1 // pred_region
      %s73 = ssub.s32 256, 256
      %74 = vsyncadd [#allocation4], %s73
      %s76 = sshll.u32 [#allocation9], 4
      %s77 = int_to_ptr.vmem [resolvable:$true] %s76
      %79 = dma.vmem_to_hbm [thread:$0]  %s77, 256, %s3, [#allocation4]
    $region29: #{tpu_custom_call.1} parent=1 // pred_fallthru
      _
    // Predicated region
    $region30: #{tpu_custom_call.1} parent=1 // pred_check
      _
    $region31: #{tpu_custom_call.1} parent=1 // pred_check_branch
      %81 = sbr.rel (0) target = $region33
    $region32: #{tpu_custom_call.1} parent=1 // pred_region
      %82 = dma.done [#allocation4], 256
    $region33: #{tpu_custom_call.1} parent=1 // pred_fallthru
      _
    %83 = vsyncpa [#allocation3], 1
    %84 = vsyncpa [#allocation8], 1
    %85 = vsyncpa [#allocation4], 1
    %86 = vsyncpa [#allocation5], 1

</llo_original>
